<compile_context>
chip_gen: v7x
topology: tpu7x:2x2x1
jax: 0.10.0
libtpu: 0.0.40
codegen_flags: <defaults>
</compile_context>

<pallas_src>
import jax
import jax.numpy as jnp
from jax.experimental import pallas as pl
from jax.experimental.pallas import tpu as pltpu


def _lstm_recurrence_kernel(xg_ref, h0_ref, c0_ref, w_hh_ref, hs_ref, cs_ref):
    """T LSTMCell steps, fully VMEM-resident, unrolled fori_loop over time.

    xg_ref:  (T, B, 4H)  precomputed x_t @ W_ih^T + (b_ih + b_hh), g-cols 2x-scaled
    h0_ref:  (B, H)      initial hidden state
    c0_ref:  (B, H)      initial cell state
    w_hh_ref:(H, 4H)     recurrent weights (transposed, g-cols 2x-scaled)
    hs_ref:  (T, B, H)   hidden state per step (output)
    cs_ref:  (T, B, H)   cell state per step (output)
    """
    T = xg_ref.shape[0]
    H = h0_ref.shape[-1]
    w_hh = w_hh_ref[...]          # hoisted load: stays in vregs across the loop

    def step(t, carry):
        h, c = carry
        # Per-step recurrent contribution only; input projection was hoisted.
        gates = xg_ref[t] + jnp.dot(h, w_hh, preferred_element_type=jnp.float32)  # (B, 4H)

        # Single full-vreg EUP pass.  The g-gate pre-activations were scaled by
        # 2 at prepare_params time, so tanh(x) = 2*sigmoid(2x) - 1 falls out of
        # the same sigmoid with one VPU fmul/fadd on the g lanes.
        sig = jax.nn.sigmoid(gates)
        i_g = sig[:, 0 * H:1 * H]
        f_g = sig[:, 1 * H:2 * H]
        g_g = 2.0 * sig[:, 2 * H:3 * H] - 1.0
        o_g = sig[:, 3 * H:4 * H]

        c_new = f_g * c + i_g * g_g
        h_new = o_g * jnp.tanh(c_new)

        hs_ref[t] = h_new
        cs_ref[t] = c_new
        return (h_new, c_new)

    jax.lax.fori_loop(0, T, step, (h0_ref[...], c0_ref[...]), unroll=True)


def prepare_params(params):
    """One-time parameter prep (hoisted out of the per-forward path)."""
    H = params["w_ih"].shape[1]
    # g-gate (3rd quarter) columns scaled by 2 -> single-sigmoid activation trick.
    scale = jnp.concatenate(
        [jnp.ones((1, 2 * H), jnp.float32),
         jnp.full((1, H), 2.0, jnp.float32),
         jnp.ones((1, H), jnp.float32)], axis=1)                     # (1, 4H)
    b_gates = (params["b_ih"] + params["b_hh"]).reshape(1, 4 * H)
    return {
        "w_ih_T": params["w_ih"].T * scale,     # (H, 4H)
        "w_hh_T": params["w_hh"].T * scale,     # (H, 4H)
        "b_gates": b_gates * scale,             # (1, 4H)
        "w_fc": params["fc_w"].T,               # (H, A)
        "b_fc": params["fc_b"].reshape(1, -1),  # (1, A)
    }


@jax.jit
def policy_rollout(xs, hx, cx, prepped):
    """Run T LSTMCell+FC steps; the sequential recurrence is one pallas_call.

    xs: (T, B, H); hx, cx: (B, H).
    Returns (outs (T, B, A), hs (T, B, H), cs (T, B, H)).
    """
    T, B, H = xs.shape

    # Input projection hoisted out of the recurrence: one batched matmul for
    # all T steps (fused by XLA under this same jit).
    xg = jnp.einsum("tbh,hg->tbg", xs, prepped["w_ih_T"]) + prepped["b_gates"]  # (T, B, 4H)

    vmem = lambda: pl.BlockSpec(memory_space=pltpu.MemorySpace.VMEM)
    hs, cs = pl.pallas_call(
        _lstm_recurrence_kernel,
        out_shape=(jax.ShapeDtypeStruct((T, B, H), jnp.float32),
                   jax.ShapeDtypeStruct((T, B, H), jnp.float32)),
        in_specs=[vmem(), vmem(), vmem(), vmem()],
        out_specs=(vmem(), vmem()),
    )(xg, hx, cx, prepped["w_hh_T"])

    # FC head hoisted out of the recurrence: one (T*B, H) @ (H, A) matmul.
    outs = jnp.einsum("tbh,ha->tba", hs, prepped["w_fc"]) + prepped["b_fc"]     # (T, B, A)
    return outs, hs, cs


def policy_forward(x, hx, cx, prepped):
    """Equivalent of Policy.forward(input, (hx, cx)) -> (output, hx', cx')."""
    outs, hs, cs = policy_rollout(x[None], hx, cx, prepped)
    return outs[0], hs[0], cs[0]


def init_params(key, input_size, nb_action):
    """Deterministic parameter init mirroring PyTorch's shapes/scale."""
    H = input_size
    ks = jax.random.split(key, 6)
    bound = 1.0 / jnp.sqrt(jnp.float32(H))
    u = lambda k, shape: jax.random.uniform(k, shape, jnp.float32, -bound, bound)
    return {
        "w_ih": u(ks[0], (4 * H, H)),      # LSTMCell weight_ih
        "w_hh": u(ks[1], (4 * H, H)),      # LSTMCell weight_hh
        "b_ih": u(ks[2], (4 * H,)),
        "b_hh": u(ks[3], (4 * H,)),
        "fc_w": u(ks[4], (nb_action, H)),  # Linear weight
        "fc_b": u(ks[5], (nb_action,)),
    }


def _reference_forward(x, hx, cx, p):
    """Pure-JAX reference matching torch.nn.LSTMCell + nn.Linear semantics."""
    gates = x @ p["w_ih"].T + p["b_ih"] + hx @ p["w_hh"].T + p["b_hh"]
    H = hx.shape[-1]
    i = jax.nn.sigmoid(gates[:, 0 * H:1 * H])
    f = jax.nn.sigmoid(gates[:, 1 * H:2 * H])
    g = jnp.tanh(gates[:, 2 * H:3 * H])
    o = jax.nn.sigmoid(gates[:, 3 * H:4 * H])
    c = f * cx + i * g
    h = o * jnp.tanh(c)
    out = h @ p["fc_w"].T + p["fc_b"]
    return out, h, c


def _reference_rollout(xs, hx, cx, p):
    def step(carry, x):
        h, c = carry
        out, h, c = _reference_forward(x, h, c, p)
        return (h, c), (out, h, c)
    _, (outs, hs, cs) = jax.lax.scan(step, (hx, cx), xs)
    return outs, hs, cs


if __name__ == "__main__":
    INPUT_SIZE = 32   # hidden == input_size in this module
    NB_ACTION = 8
    BATCH = 2
    T = 8

    key = jax.random.PRNGKey(0)
    k_x, k_xs, k_h, k_c, k_p = jax.random.split(key, 5)

    x = jax.random.normal(k_x, (BATCH, INPUT_SIZE), jnp.float32)
    xs = jax.random.normal(k_xs, (T, BATCH, INPUT_SIZE), jnp.float32)
    hx = jax.random.normal(k_h, (BATCH, INPUT_SIZE), jnp.float32)
    cx = jax.random.normal(k_c, (BATCH, INPUT_SIZE), jnp.float32)

    params = init_params(k_p, INPUT_SIZE, NB_ACTION)
    prepped = prepare_params(params)   # one-time transpose / bias-sum / g-gate 2x scaling

    # --- single-step forward (matches Policy.forward semantics) -------------
    out, h_new, c_new = policy_forward(x, hx, cx, prepped)
    jax.block_until_ready((out, h_new, c_new))
    ref_out, ref_h, ref_c = _reference_forward(x, hx, cx, params)
    assert jnp.allclose(out, ref_out, rtol=1e-3, atol=1e-3)
    assert jnp.allclose(h_new, ref_h, rtol=1e-3, atol=1e-3)
    assert jnp.allclose(c_new, ref_c, rtol=1e-3, atol=1e-3)

    # --- T-step rollout with the recurrence in ONE grid-free pallas_call ----
    outs, hs, cs = policy_rollout(xs, hx, cx, prepped)
    jax.block_until_ready((outs, hs, cs))
    r_outs, r_hs, r_cs = _reference_rollout(xs, hx, cx, params)
    assert jnp.allclose(outs, r_outs, rtol=1e-3, atol=1e-3)
    assert jnp.allclose(hs, r_hs, rtol=1e-3, atol=1e-3)
    assert jnp.allclose(cs, r_cs, rtol=1e-3, atol=1e-3)

    print("KERNEL_OK")
</pallas_src>

<mosaic_0001>
module attributes {stable_mosaic.version = 11 : i64} {
  func.func @_lstm_recurrence_kernel(%arg0: memref<1x2x128xf32, #tpu.memory_space<vmem>>, %arg1: memref<2x32xf32, #tpu.memory_space<vmem>>, %arg2: memref<2x32xf32, #tpu.memory_space<vmem>>, %arg3: memref<32x128xf32, #tpu.memory_space<vmem>>, %arg4: memref<1x2x32xf32, #tpu.memory_space<vmem>>, %arg5: memref<1x2x32xf32, #tpu.memory_space<vmem>>) attributes {dimension_semantics = [], scalar_prefetch = 0 : i64, scratch_operands = 0 : i64, tpu.core_type = #tpu.core_type<tc>} {
    %c0 = arith.constant 0 : index
    %c0_0 = arith.constant 0 : index
    %0 = vector.load %arg3[%c0, %c0_0] : memref<32x128xf32, #tpu.memory_space<vmem>>, vector<32x128xf32>
    %c0_1 = arith.constant 0 : index
    %c0_2 = arith.constant 0 : index
    %1 = vector.load %arg1[%c0_1, %c0_2] : memref<2x32xf32, #tpu.memory_space<vmem>>, vector<2x32xf32>
    %c0_3 = arith.constant 0 : index
    %c0_4 = arith.constant 0 : index
    %2 = vector.load %arg2[%c0_3, %c0_4] : memref<2x32xf32, #tpu.memory_space<vmem>>, vector<2x32xf32>
    %c0_i32 = arith.constant 0 : i32
    %3 = arith.index_cast %c0_i32 : i32 to index
    %c0_5 = arith.constant 0 : index
    %c0_6 = arith.constant 0 : index
    %4 = vector.load %arg0[%3, %c0_5, %c0_6] : memref<1x2x128xf32, #tpu.memory_space<vmem>>, vector<1x2x128xf32>
    %5 = vector.shape_cast %4 : vector<1x2x128xf32> to vector<2x128xf32>
    %cst = arith.constant dense<0.000000e+00> : vector<2x128xf32>
    %6 = tpu.matmul %1, %0, %cst {dimension_numbers = #tpu.dot_dimension_numbers<[1], [0], [0], [1], [0, 0, 1, 1], [], []>} : vector<2x32xf32>, vector<32x128xf32>, vector<2x128xf32> -> vector<2x128xf32>
    %7 = arith.addf %5, %6 : vector<2x128xf32>
    %8 = arith.negf %7 : vector<2x128xf32>
    %9 = math.exp %8 : vector<2x128xf32>
    %cst_7 = arith.constant 1.000000e+00 : f32
    %10 = vector.broadcast %cst_7 : f32 to vector<2x128xf32>
    %11 = arith.addf %10, %9 : vector<2x128xf32>
    %12 = arith.divf %10, %11 : vector<2x128xf32>
    %13 = vector.extract_strided_slice %12 {offsets = [0, 0], sizes = [2, 32], strides = [1, 1]} : vector<2x128xf32> to vector<2x32xf32>
    %14 = vector.extract_strided_slice %12 {offsets = [0, 32], sizes = [2, 32], strides = [1, 1]} : vector<2x128xf32> to vector<2x32xf32>
    %15 = vector.extract_strided_slice %12 {offsets = [0, 64], sizes = [2, 32], strides = [1, 1]} : vector<2x128xf32> to vector<2x32xf32>
    %cst_8 = arith.constant 2.000000e+00 : f32
    %16 = vector.broadcast %cst_8 : f32 to vector<2x32xf32>
    %17 = arith.mulf %16, %15 : vector<2x32xf32>
    %cst_9 = arith.constant 1.000000e+00 : f32
    %18 = vector.broadcast %cst_9 : f32 to vector<2x32xf32>
    %19 = arith.subf %17, %18 : vector<2x32xf32>
    %20 = vector.extract_strided_slice %12 {offsets = [0, 96], sizes = [2, 32], strides = [1, 1]} : vector<2x128xf32> to vector<2x32xf32>
    %21 = arith.mulf %14, %2 : vector<2x32xf32>
    %22 = arith.mulf %13, %19 : vector<2x32xf32>
    %23 = arith.addf %21, %22 : vector<2x32xf32>
    %24 = math.tanh %23 : vector<2x32xf32>
    %25 = arith.mulf %20, %24 : vector<2x32xf32>
    %26 = arith.index_cast %c0_i32 : i32 to index
    %c0_10 = arith.constant 0 : index
    %c0_11 = arith.constant 0 : index
    %27 = vector.load %arg4[%26, %c0_10, %c0_11] : memref<1x2x32xf32, #tpu.memory_space<vmem>>, vector<1x2x32xf32>
    %28 = vector.shape_cast %27 : vector<1x2x32xf32> to vector<2x32xf32>
    %29 = vector.shape_cast %25 : vector<2x32xf32> to vector<1x2x32xf32>
    tpu.vector_store %arg4[%26, %c0_10, %c0_11], %29 {strides = array<i32>} : memref<1x2x32xf32, #tpu.memory_space<vmem>>, vector<1x2x32xf32>,
    %30 = arith.index_cast %c0_i32 : i32 to index
    %c0_12 = arith.constant 0 : index
    %c0_13 = arith.constant 0 : index
    %31 = vector.load %arg5[%30, %c0_12, %c0_13] : memref<1x2x32xf32, #tpu.memory_space<vmem>>, vector<1x2x32xf32>
    %32 = vector.shape_cast %31 : vector<1x2x32xf32> to vector<2x32xf32>
    %33 = vector.shape_cast %23 : vector<2x32xf32> to vector<1x2x32xf32>
    tpu.vector_store %arg5[%30, %c0_12, %c0_13], %33 {strides = array<i32>} : memref<1x2x32xf32, #tpu.memory_space<vmem>>, vector<1x2x32xf32>,
    %c1_i32 = arith.constant 1 : i32
    return
  }
}

</mosaic_0001>

<llo_original>
// kernel: policy_rollout.1
$region0: #{policy_rollout.1}
  #allocation0 [shape = 'u32[]', space=smem, size = 0x4, offset = 0x4, fixed_abs, tag = 'smem constant byte address 0x4 - core index']
  #allocation1 [shape = 'u32[144,128]{1,0:T(1,128)}', space=vmem, size = 0x12000, scoped, tag = 'internal scratch']
  %s0 = inlined_call_operand.vmem [shape: f32[1,2,128], index: 0, kind: input, shape index: {}]
  %s1 = inlined_call_operand.vmem [shape: f32[2,32], index: 1, kind: input, shape index: {}]
  %s2 = inlined_call_operand.vmem [shape: f32[2,32], index: 2, kind: input, shape index: {}]
  %s3 = inlined_call_operand.vmem [shape: f32[32,128], index: 3, kind: input, shape index: {}]
  %s4 = inlined_call_operand.vmem [shape: f32[1,2,32], index: 4, kind: output, shape index: {0}]
  %s5 = inlined_call_operand.hbm [shape: f32[1,2,32], index: 5, kind: output, shape index: {1}]
  %6 = xla_tuple %s4, %s5
  %s7 = sld [smem:[#allocation0]]
  $region34: #{policy_rollout.1} parent=0
    _
  %s9 = ssub.s32 1, %s7
  %s10 = scalar_select 0, %s9, %s7
  $region1: #{policy_rollout.1} parent=0
    #allocation2 [shape = 'u8[1024]{0}', space=vmem, size = 0x400, scoped, tag = 'output window, operand 1, single buffered']
    #allocation3 [shape = 's32[1]{0}', space=sflag, size = 0x4, scoped, tag = 'scoped memory for policy_rollout.1']
    %11 = vsyncpa [#allocation3], 0
    // Predicated region
    $region2: #{policy_rollout.1} parent=1 // pred_check
      _
    $region3: #{policy_rollout.1} parent=1 // pred_check_branch
      %13 = sbr.rel (0) target = $region5
    $region4: #{policy_rollout.1} parent=1 // pred_region
      _
    $region5: #{policy_rollout.1} parent=1 // pred_fallthru
      _
    // Predicated region
    $region6: #{policy_rollout.1} parent=1 // pred_check
      _
    $region7: #{policy_rollout.1} parent=1 // pred_check_branch
      %15 = sbr.rel (0) target = $region9
    $region8: #{policy_rollout.1} parent=1 // pred_region
      _
    $region9: #{policy_rollout.1} parent=1 // pred_fallthru
      _
    // Predicated region
    $region10: #{policy_rollout.1} parent=1 // pred_check
      _
    $region11: #{policy_rollout.1} parent=1 // pred_check_branch
      %17 = sbr.rel (0) target = $region13
    $region12: #{policy_rollout.1} parent=1 // pred_region
      _
    $region13: #{policy_rollout.1} parent=1 // pred_fallthru
      _
    // Predicated region
    $region14: #{policy_rollout.1} parent=1 // pred_check
      _
    $region15: #{policy_rollout.1} parent=1 // pred_check_branch
      %19 = sbr.rel (0) target = $region17
    $region16: #{policy_rollout.1} parent=1 // pred_region
      _
    $region17: #{policy_rollout.1} parent=1 // pred_fallthru
      _
    %v20 = vld [vmem:[%s3] sm:$0xff]
    %v21 = vld [vmem:[%s3 + $0x8] sm:$0xff]
    %v22 = vld [vmem:[%s3 + $0x10] sm:$0xff]
    %v23 = vld [vmem:[%s3 + $0x18] sm:$0xff]
    %v24 = vld [vmem:[%s1] sm:$0x3]
    %v25 = vld [vmem:[%s2] sm:$0x3]
    %v26 = vld [vmem:[%s0] sm:$0x3]
    %vm27 = vcmask 261120
    %v29 = vsel %vm27, %v24, 0
    %31 = vmatprep.subr.mxu0 0.0
    %32 = vmatpush1.msra.mxu0 %v20
    %33 = vmatprep.subr.mxu0 0.0
    %34 = vmatpush1.msra.mxu0 %v21
    %35 = vmatprep.subr.mxu0 0.0
    %36 = vmatpush1.msra.mxu0 %v22
    %37 = vmatprep.subr.mxu0 0.0
    %38 = vmatpush1.msra.mxu0 %v23
    %39 = vmatprep.subr.mxu0 0.0
    %40 = vmatpush1.msra.mxu0 0.0
    %41 = vmatprep.subr.mxu0 0.0
    %42 = vmatpush1.msra.mxu0 0.0
    %43 = vmatprep.subr.mxu0 0.0
    %44 = vmatpush1.msra.mxu0 0.0
    %45 = vmatprep.subr.mxu0 0.0
    %46 = vmatpush1.msra.mxu0 0.0
    %47 = vmatprep.subr.mxu0 0.0
    %48 = vmatpush1.msra.mxu0 0.0
    %49 = vmatprep.subr.mxu0 0.0
    %50 = vmatpush1.msra.mxu0 0.0
    %51 = vmatprep.subr.mxu0 0.0
    %52 = vmatpush1.msra.mxu0 0.0
    %53 = vmatprep.subr.mxu0 0.0
    %54 = vmatpush1.msra.mxu0 0.0
    %55 = vmatprep.subr.mxu0 0.0
    %56 = vmatpush1.msra.mxu0 0.0
    %57 = vmatprep.subr.mxu0 0.0
    %58 = vmatpush1.msra.mxu0 0.0
    %59 = vmatprep.subr.mxu0 0.0
    %60 = vmatpush1.msra.mxu0 0.0
    %61 = vmatprep.subr.mxu0 0.0
    %62 = vmatpush1.msra.mxu0 0.0
    %63 = vmatprep.subr.mxu0 0.0
    %64 = vmatpush1.msra.mxu0 0.0
    %65 = vmatprep.subr.mxu0 0.0
    %66 = vmatpush1.msra.mxu0 0.0
    %67 = vmatprep.subr.mxu0 0.0
    %68 = vmatpush1.msra.mxu0 0.0
    %69 = vmatprep.subr.mxu0 0.0
    %70 = vmatpush1.msra.mxu0 0.0
    %71 = vmatprep.subr.mxu0 0.0
    %72 = vmatpush1.msra.mxu0 0.0
    %73 = vmatprep.subr.mxu0 0.0
    %74 = vmatpush1.msra.mxu0 0.0
    %75 = vmatprep.subr.mxu0 0.0
    %76 = vmatpush1.msra.mxu0 0.0
    %77 = vmatprep.subr.mxu0 0.0
    %78 = vmatpush1.msra.mxu0 0.0
    %79 = vmatprep.subr.mxu0 0.0
    %80 = vmatpush1.msra.mxu0 0.0
    %81 = vmatprep.subr.mxu0 0.0
    %82 = vmatpush1.msra.mxu0 0.0
    %83 = vmatprep.subr.mxu0 0.0
    %84 = vmatpush1.msra.mxu0 0.0
    %85 = vmatprep.subr.mxu0 0.0
    %86 = vmatpush1.msra.mxu0 0.0
    %87 = vmatprep.subr.mxu0 0.0
    %88 = vmatpush1.msra.mxu0 0.0
    %89 = vmatprep.subr.mxu0 0.0
    %90 = vmatpush1.msra.mxu0 0.0
    %91 = vmatprep.subr.mxu0 0.0
    %92 = vmatpush1.msra.mxu0 0.0
    %93 = vmatprep.subr.mxu0 0.0
    %94 = vmatpush1.msra.mxu0 0.0
    %95 = vmatprep.mubr.f32.mxu0 0.0
    %96 = vmatmul.mubr.f32.gmra.mrb[0].mxu0 %v29
    %v97 = vpop.f32.mrb[0].mxu0
    %v98 = vadd.f32 0.0, %v97
    %v99 = vpop.f32.mrb[0].mxu0
    %100 = vdwg.mxu0
    %v101 = vadd.f32 %v26, %v98
    %v102 = vxor.u32 %v101, 2147483648
    %v103 = vmul.f32 %v102, 1.442695
    %v104 = vpow.pop %v103
    %v105 = vadd.f32 %v104, 1.0
    %v106 = vrcp.pop %v105
    %v107 = vmul.f32 1.0, %v106
    %v108 = vmul.f32 %v107, 2.0
    %v109 = vsub.f32 %v108, 1.0
    %111 = vrot.lane.b32.xlu0 %v25, 32
    %v112 = vpop.permute.xlu0 %111
    %v114 = vmul.f32 %v107, %v112
    %116 = vrot.lane.b32.xlu0 %v109, 64
    %v117 = vpop.permute.xlu0 %116
    %v119 = vmul.f32 %v107, %v117
    %121 = vrot.lane.b32.xlu0 %v119, 32
    %v122 = vpop.permute.xlu0 %121
    %v124 = vadd.f32 %v114, %v122
    %v125 = vtanh.pop %v124
    %127 = vrot.lane.b32.xlu0 %v125, 64
    %v128 = vpop.permute.xlu0 %127
    %v130 = vmul.f32 %v107, %v128
    %132 = vrot.lane.b32.xlu0 %v130, 32
    %v133 = vpop.permute.xlu0 %132
    %vm135 = vcmask 254976
    %136 = vst.msk [vmem:[%s4] sm:$0x3] %vm135, %v133
    %138 = vrot.lane.b32.xlu0 %v124, 96
    %v139 = vpop.permute.xlu0 %138
    %141 = vst.msk [vmem:[#allocation2] sm:$0x3] %vm135, %v139
    // Predicated region
    $region18: #{policy_rollout.1} parent=1 // pred_check
      _
    $region19: #{policy_rollout.1} parent=1 // pred_check_branch
      %143 = sbr.rel (0) target = $region21
    $region20: #{policy_rollout.1} parent=1 // pred_region
      _
    $region21: #{policy_rollout.1} parent=1 // pred_fallthru
      _
    // Predicated region
    $region22: #{policy_rollout.1} parent=1 // pred_check
      _
    $region23: #{policy_rollout.1} parent=1 // pred_check_branch
      %145 = sbr.rel (0) target = $region25
    $region24: #{policy_rollout.1} parent=1 // pred_region
      %s147 = ssub.s32 32, 32
      %148 = vsyncadd [#allocation3], %s147
      %s150 = sshll.u32 [#allocation2], 4
      %s151 = int_to_ptr.vmem [resolvable:$true] %s150
      %153 = dma.vmem_to_hbm [thread:$0]  %s151, 32, %s5, [#allocation3]
    $region25: #{policy_rollout.1} parent=1 // pred_fallthru
      _
    // Predicated region
    $region26: #{policy_rollout.1} parent=1 // pred_check
      _
    $region27: #{policy_rollout.1} parent=1 // pred_check_branch
      %155 = sbr.rel (0) target = $region29
    $region28: #{policy_rollout.1} parent=1 // pred_region
      _
    $region29: #{policy_rollout.1} parent=1 // pred_fallthru
      _
    // Predicated region
    $region30: #{policy_rollout.1} parent=1 // pred_check
      _
    $region31: #{policy_rollout.1} parent=1 // pred_check_branch
      %157 = sbr.rel (0) target = $region33
    $region32: #{policy_rollout.1} parent=1 // pred_region
      %158 = dma.done [#allocation3], 32
    $region33: #{policy_rollout.1} parent=1 // pred_fallthru
      _
    %159 = vsyncpa [#allocation3], 1

</llo_original>
